<compile_context>
chip_gen: v5e
topology: v5e:2x2
jax: 0.10.0
libtpu: 0.0.40
codegen_flags: <defaults>
</compile_context>

<pallas_src>
import functools
import math

import jax
import jax.numpy as jnp
from jax.experimental import pallas as pl
from jax.experimental.pallas import tpu as pltpu


# --------------------------------------------------------------------------- #
# Kernel
# --------------------------------------------------------------------------- #
def _copy_kernel(x1_hbm, x2_hbm, o_hbm, buf, insem, outsem, *,
                 R, tr, s, rem, nsteps):
    """Grid step t copies input row-tile t of both batch rows into the output.

    Flat layout per batch row b (rows of width Lw):
        out rows [0, R)       <- x_b rows [0, R)          ("v1" region)
        out rows [R, R + PR)  <- x_b rows [0, PR)         ("v3" prefix region)
    where PR = s * tr + rem.  Tile t covers input rows [t*tr, (t+1)*tr).

    Per-step schedule (manual pipeline, program order):
      1. wait the PREVIOUS step's output DMAs  (deferred by one iteration)
      2. start the input DMA for block t+1     (its buffer slot is only free
                                                because step 1 just drained it)
      3. wait the input DMA for block t
      4. start this step's output DMAs straight from the resident VMEM tile
      5. on the last step, drain this step's output DMAs
    """
    t = pl.program_id(0)
    slot = t % 2            # input buffer slot == output-semaphore parity
    nxt = 1 - slot

    srcs = (x1_hbm, x2_hbm)

    def start_in(block, slot_, b):
        pltpu.make_async_copy(srcs[b].at[pl.ds(block * tr, tr), :],
                              buf.at[slot_, b],
                              insem.at[slot_, b]).start()

    def wait_in(slot_, b):
        # Only the transfer size matters for a wait; block-0-shaped refs suffice.
        pltpu.make_async_copy(srcs[b].at[pl.ds(0, tr), :],
                              buf.at[slot_, b],
                              insem.at[slot_, b]).wait()

    def start_out(b, dst_row, nrows, region):
        pltpu.make_async_copy(buf.at[slot, b, pl.ds(0, nrows), :],
                              o_hbm.at[b, pl.ds(dst_row, nrows), :],
                              outsem.at[slot, 2 * b + region]).start()

    def wait_out(par, b, nrows, region):
        pltpu.make_async_copy(buf.at[0, b, pl.ds(0, nrows), :],
                              o_hbm.at[b, pl.ds(0, nrows), :],
                              outsem.at[par, 2 * b + region]).wait()

    # -- 1. deferred wait on the previous step's output DMAs ----------------- #
    @pl.when(t > 0)
    def _wait_prev():
        prev_par = 1 - slot
        for b in range(2):
            wait_out(prev_par, b, tr, 0)          # v1 region: every step

        @pl.when(t - 1 < s)
        def _():                                  # previous tile: full prefix
            for b in range(2):
                wait_out(prev_par, b, tr, 1)

        if rem:                                   # static: straddling tile exists
            @pl.when(t - 1 == s)
            def _():                              # previous tile straddled PR
                for b in range(2):
                    wait_out(prev_par, b, rem, 1)

    # -- 2. input pipeline: prime block 0, prefetch block t+1 ---------------- #
    @pl.when(t == 0)
    def _prime():
        for b in range(2):
            start_in(0, 0, b)

    @pl.when(t + 1 < nsteps)
    def _prefetch():
        for b in range(2):
            start_in(t + 1, nxt, b)

    # -- 3. wait for this step's input tile ----------------------------------- #
    for b in range(2):
        wait_in(slot, b)

    # -- 4. start this step's output DMAs (no vreg round trip) ---------------- #
    for b in range(2):
        start_out(b, t * tr, tr, 0)               # v1 region

    @pl.when(t < s)
    def _full_prefix():
        for b in range(2):
            start_out(b, R + t * tr, tr, 1)       # v3 region, whole tile

    if rem:
        @pl.when(t == s)
        def _straddle():
            for b in range(2):
                start_out(b, R + s * tr, rem, 1)  # v3 region, partial tile

    # -- 5. drain the final step's output DMAs -------------------------------- #
    @pl.when(t == nsteps - 1)
    def _drain():
        for b in range(2):
            wait_out(slot, b, tr, 0)

        @pl.when(t < s)
        def _():
            for b in range(2):
                wait_out(slot, b, tr, 1)

        if rem:
            @pl.when(t == s)
            def _():
                for b in range(2):
                    wait_out(slot, b, rem, 1)


# --------------------------------------------------------------------------- #
# Tile planning
# --------------------------------------------------------------------------- #
def _divisors(n):
    out, i = set(), 1
    while i * i <= n:
        if n % i == 0:
            out.add(i)
            out.add(n // i)
        i += 1
    return sorted(out)


def _vmem_capacity_bytes():
    try:
        info = pltpu.get_tpu_info()
        cap = getattr(info, "vmem_capacity_bytes", None)
        if cap:
            return int(cap)
    except Exception:
        pass
    return 64 << 20          # conservative (v7x-sized) default


def _tile_cap_bytes(vmem_cap):
    # 4 resident tiles (2 pipeline slots x 2 inputs).  Keep them within ~1/3 of
    # physical VMEM: ~8 MiB tiles on v5e/v6e (128 MiB), ~5 MiB on v7x (64 MiB).
    return max(512 << 10, min(8 << 20, (vmem_cap // 3) // 4))


def _plan_tiles(N, P, itemsize, tile_cap_bytes, sublane,
                lane_width=None, row_tile=None):
    """Pick (Lw, tr): lane width (multiple of 128, divides both regions) and a
    row tile dividing R.  Returns None when no dense Pallas tiling exists."""
    G = math.gcd(N, P)
    if lane_width is None:
        cands = [d for d in _divisors(G) if d % 128 == 0 and d <= 1024]
        if not cands:
            # TODO(synk): pad-based Pallas path for spatial sizes where no
            # 128-multiple lane width divides both regions; routed to XLA now.
            return None
        Lw = max(cands)
    else:
        Lw = int(lane_width)
        if Lw % 128 != 0 or N % Lw != 0 or P % Lw != 0:
            return None

    R, PR = N // Lw, P // Lw
    if row_tile is None:
        cap = max(1, tile_cap_bytes // (Lw * itemsize))
        divs = [d for d in _divisors(R) if d <= cap]
        aligned = [d for d in divs if d % sublane == 0]   # dtype-aware sublanes
        tr = max(aligned) if aligned else max(divs)
        if tr * Lw * itemsize < (128 << 10):
            return None       # tiles too small to beat XLA's fused copy
    else:
        tr = int(row_tile)
        if R % tr != 0:
            return None
    return Lw, tr, R, PR


# --------------------------------------------------------------------------- #
# Wrapper
# --------------------------------------------------------------------------- #
def _xla_forward(x1, x2, K):
    v1 = jnp.concatenate([x1, x2], axis=0)
    v3 = v1[:, 0:K]
    return jnp.concatenate([v1, v3], axis=1)


def _forward_impl(x1, x2, *, prefix_limit, lane_width=None, row_tile=None,
                  use_pallas=None):
    assert x1.ndim == 4 and x2.ndim == 4
    # torch.cat along dim 0 requires the non-batch dims to match, so the wrapper
    # takes equal-shaped (1, C, H, W) inputs.
    assert x1.shape == x2.shape and x1.shape[0] == 1
    assert x1.dtype == x2.dtype

    _, C, H, W = x1.shape
    K = min(prefix_limit, C)                 # python/torch slicing clamps the stop
    L = H * W
    N = C * L                                # elements per batch row (v1 region)
    P = K * L                                # appended prefix elements (v3 region)
    itemsize = jnp.dtype(x1.dtype).itemsize
    sublane = max(1, 32 // itemsize)         # 8 f32 / 16 bf16 / 32 int8

    moved_bytes = (2 * N + 2 * (N + P)) * itemsize
    if use_pallas is None:
        run_pallas = moved_bytes >= (2 << 20)      # tiny problems -> plain XLA
    else:
        run_pallas = bool(use_pallas)

    vmem_cap = _vmem_capacity_bytes()
    plan = _plan_tiles(N, P, itemsize, _tile_cap_bytes(vmem_cap), sublane,
                       lane_width=lane_width, row_tile=row_tile)
    if not run_pallas or plan is None:
        return _xla_forward(x1, x2, K)

    Lw, tr, R, PR = plan
    nsteps = R // tr
    s = PR // tr                              # index of the straddling tile
    rem = PR % tr                             # rows of the straddling tile
    R_out = R + PR

    x1f = x1.reshape(R, Lw)                   # free (contiguous) reshapes
    x2f = x2.reshape(R, Lw)

    scratch_bytes = 2 * 2 * tr * Lw * itemsize    # 2 slots x 2 inputs
    vmem_limit = int(min(vmem_cap - (4 << 20),
                         max(32 << 20, scratch_bytes + (16 << 20))))

    kernel = functools.partial(_copy_kernel, R=R, tr=tr, s=s, rem=rem,
                               nsteps=nsteps)

    out_flat = pl.pallas_call(
        kernel,
        out_shape=jax.ShapeDtypeStruct((2, R_out, Lw), x1.dtype),
        grid_spec=pltpu.PrefetchScalarGridSpec(
            num_scalar_prefetch=0,
            grid=(nsteps,),
            in_specs=[
                pl.BlockSpec(memory_space=pl.ANY),     # raw HBM, manual DMA
                pl.BlockSpec(memory_space=pl.ANY),
            ],
            out_specs=pl.BlockSpec(memory_space=pl.ANY),
            scratch_shapes=[
                pltpu.VMEM((2, 2, tr, Lw), x1.dtype),  # [slot, batch-row] tiles
                pltpu.SemaphoreType.DMA((2, 2)),       # input  sems [slot, row]
                pltpu.SemaphoreType.DMA((2, 4)),       # output sems [parity, row*2+region]
            ]),
        compiler_params=pltpu.CompilerParams(
            # Cross-step pipeline state (deferred waits, buffer slots) must stay
            # on one core, so the grid axis is "arbitrary", not "parallel".
            dimension_semantics=("arbitrary",),
            vmem_limit_bytes=vmem_limit),
        cost_estimate=pl.CostEstimate(
            flops=0, transcendentals=0, bytes_accessed=moved_bytes),
    )(x1f, x2f)

    return out_flat.reshape(2, C + K, H, W)


def model_forward(x1, x2, *, lane_width=None, row_tile=None, use_pallas=None):
    """Model.forward for equal-shaped (1, C, H, W) inputs.

    Output: (2, C + K, H, W) with K = min(32532, C)."""
    return _forward_impl(x1, x2, prefix_limit=32532, lane_width=lane_width,
                         row_tile=row_tile, use_pallas=use_pallas)


def _reference(x1, x2, limit=32532):
    v1 = jnp.concatenate([x1, x2], axis=0)
    v2 = v1[:, 0:v1.shape[1]]                 # the 0:2**63-1 slice is a no-op
    v3 = v2[:, 0:min(limit, v2.shape[1])]
    return jnp.concatenate([v1, v3], axis=1)


# --------------------------------------------------------------------------- #
# Self-test
# --------------------------------------------------------------------------- #
if __name__ == "__main__":
    key = jax.random.PRNGKey(0)
    k1, k2 = jax.random.split(key)
    # Small shapes consistent with the module: batch=1 each, C=40, H=W=16.
    x1 = jax.random.normal(k1, (1, 40, 16, 16), dtype=jnp.float32)
    x2 = jax.random.normal(k2, (1, 40, 16, 16), dtype=jnp.float32)

    # Force the Pallas path (auto mode would route this tiny problem to XLA) and
    # small tiles so several grid steps + the deferred-wait pipeline run.
    out = model_forward(x1, x2, lane_width=256, row_tile=8, use_pallas=True)
    out = jax.block_until_ready(out)
    ref = _reference(x1, x2)
    assert out.shape == ref.shape, (out.shape, ref.shape)
    assert jnp.array_equal(out, ref), "mismatch vs reference (K = 32532 path)"

    # Extra coverage: a short prefix exercises the straddling-tile and
    # no-prefix branches (impossible with small C under the real 32532 limit).
    out2 = _forward_impl(x1, x2, prefix_limit=11, lane_width=256, row_tile=8,
                         use_pallas=True)
    out2 = jax.block_until_ready(out2)
    ref2 = _reference(x1, x2, limit=11)
    assert out2.shape == ref2.shape, (out2.shape, ref2.shape)
    assert jnp.array_equal(out2, ref2), "mismatch vs reference (short-prefix path)"

    print("KERNEL_OK")
</pallas_src>

<mosaic_0001>
module attributes {stable_mosaic.version = 11 : i64} {
  func.func @_copy_kernel(%arg0: i32, %arg1: memref<40x256xf32, #tpu.memory_space<any>>, %arg2: memref<40x256xf32, #tpu.memory_space<any>>, %arg3: memref<2x80x256xf32, #tpu.memory_space<any>>, %arg4: memref<2x2x8x256xf32, #tpu.memory_space<vmem>>, %arg5: memref<2x2x!tpu.dma_semaphore, #tpu.memory_space<semaphore_mem>>, %arg6: memref<2x4x!tpu.dma_semaphore, #tpu.memory_space<semaphore_mem>>) attributes {dimension_semantics = [#tpu.dimension_semantics<arbitrary>], iteration_bounds = array<i64: 5>, scalar_prefetch = 0 : i64, scratch_operands = 3 : i64, tpu.core_type = #tpu.core_type<tc>, window_params = [{}, {}, {}]} {
    %c2_i32 = arith.constant 2 : i32
    %c0_i32 = arith.constant 0 : i32
    %0 = arith.cmpi eq, %c2_i32, %c0_i32 : i32
    %c1_i32 = arith.constant 1 : i32
    %1 = arith.select %0, %c1_i32, %c2_i32 : i32
    %2 = arith.remsi %arg0, %1 : i32
    %c0_i32_0 = arith.constant 0 : i32
    %3 = arith.cmpi ne, %2, %c0_i32_0 : i32
    %c0_i32_1 = arith.constant 0 : i32
    %4 = arith.cmpi slt, %2, %c0_i32_1 : i32
    %c0_i32_2 = arith.constant 0 : i32
    %5 = arith.cmpi slt, %1, %c0_i32_2 : i32
    %6 = arith.xori %4, %5 : i1
    %7 = arith.andi %6, %3 : i1
    %8 = arith.addi %2, %1 : i32
    %9 = arith.select %7, %8, %2 : i32
    %c1_i32_3 = arith.constant 1 : i32
    %10 = arith.subi %c1_i32_3, %9 : i32
    %c0_i32_4 = arith.constant 0 : i32
    %11 = arith.cmpi sgt, %arg0, %c0_i32_4 : i32
    %12 = arith.extui %11 : i1 to i32
    %c0_i32_5 = arith.constant 0 : i32
    %13 = arith.cmpi ne, %12, %c0_i32_5 : i32
    scf.if %13 {
      %c1_i32_38 = arith.constant 1 : i32
      %51 = arith.subi %c1_i32_38, %9 : i32
      %c0_i32_39 = arith.constant 0 : i32
      %c0_i32_40 = arith.constant 0 : i32
      %c0_i32_41 = arith.constant 0 : i32
      %c0_i32_42 = arith.constant 0 : i32
      %c0_i32_43 = arith.constant 0 : i32
      %c0_i32_44 = arith.constant 0 : i32
      %52 = tpu.memref_slice %arg4[%c0_i32_39, %c0_i32_40, %c0_i32_43, %c0_i32_44] : memref<2x2x8x256xf32, #tpu.memory_space<vmem>> -> memref<1x1x8x256xf32, #tpu.memory_space<vmem>>
      %53 = tpu.memref_squeeze %52 : memref<1x1x8x256xf32, #tpu.memory_space<vmem>> -> memref<8x256xf32, #tpu.memory_space<vmem>>
      %c0_i32_45 = arith.constant 0 : i32
      %c0_i32_46 = arith.constant 0 : i32
      %54 = tpu.memref_slice %arg3[%c0_i32_41, %c0_i32_45, %c0_i32_46] : memref<2x80x256xf32, #tpu.memory_space<any>> -> memref<1x8x256xf32, #tpu.memory_space<any>>
      %55 = tpu.memref_squeeze %54 : memref<1x8x256xf32, #tpu.memory_space<any>> -> memref<8x256xf32, #tpu.memory_space<any>>
      %56 = tpu.memref_slice %arg6[%51, %c0_i32_42] : memref<2x4x!tpu.dma_semaphore, #tpu.memory_space<semaphore_mem>> -> memref<1x1x!tpu.dma_semaphore, #tpu.memory_space<semaphore_mem>>
      %57 = tpu.memref_squeeze %56 : memref<1x1x!tpu.dma_semaphore, #tpu.memory_space<semaphore_mem>> -> memref<!tpu.dma_semaphore, #tpu.memory_space<semaphore_mem>>
      tpu.wait_dma2 semaphore(%57 : memref<!tpu.dma_semaphore, #tpu.memory_space<semaphore_mem>>) src(%53 : memref<8x256xf32, #tpu.memory_space<vmem>>) dst(%55 : memref<8x256xf32, #tpu.memory_space<any>>)
      %c0_i32_47 = arith.constant 0 : i32
      %c1_i32_48 = arith.constant 1 : i32
      %c1_i32_49 = arith.constant 1 : i32
      %c2_i32_50 = arith.constant 2 : i32
      %c0_i32_51 = arith.constant 0 : i32
      %c0_i32_52 = arith.constant 0 : i32
      %58 = tpu.memref_slice %arg4[%c0_i32_47, %c1_i32_48, %c0_i32_51, %c0_i32_52] : memref<2x2x8x256xf32, #tpu.memory_space<vmem>> -> memref<1x1x8x256xf32, #tpu.memory_space<vmem>>
      %59 = tpu.memref_squeeze %58 : memref<1x1x8x256xf32, #tpu.memory_space<vmem>> -> memref<8x256xf32, #tpu.memory_space<vmem>>
      %c0_i32_53 = arith.constant 0 : i32
      %c0_i32_54 = arith.constant 0 : i32
      %60 = tpu.memref_slice %arg3[%c1_i32_49, %c0_i32_53, %c0_i32_54] : memref<2x80x256xf32, #tpu.memory_space<any>> -> memref<1x8x256xf32, #tpu.memory_space<any>>
      %61 = tpu.memref_squeeze %60 : memref<1x8x256xf32, #tpu.memory_space<any>> -> memref<8x256xf32, #tpu.memory_space<any>>
      %62 = tpu.memref_slice %arg6[%51, %c2_i32_50] : memref<2x4x!tpu.dma_semaphore, #tpu.memory_space<semaphore_mem>> -> memref<1x1x!tpu.dma_semaphore, #tpu.memory_space<semaphore_mem>>
      %63 = tpu.memref_squeeze %62 : memref<1x1x!tpu.dma_semaphore, #tpu.memory_space<semaphore_mem>> -> memref<!tpu.dma_semaphore, #tpu.memory_space<semaphore_mem>>
      tpu.wait_dma2 semaphore(%63 : memref<!tpu.dma_semaphore, #tpu.memory_space<semaphore_mem>>) src(%59 : memref<8x256xf32, #tpu.memory_space<vmem>>) dst(%61 : memref<8x256xf32, #tpu.memory_space<any>>)
      %c1_i32_55 = arith.constant 1 : i32
      %64 = arith.subi %arg0, %c1_i32_55 : i32
      %c5_i32_56 = arith.constant 5 : i32
      %65 = arith.cmpi slt, %64, %c5_i32_56 : i32
      %66 = arith.extui %65 : i1 to i32
      %c0_i32_57 = arith.constant 0 : i32
      %67 = arith.cmpi ne, %66, %c0_i32_57 : i32
      scf.if %67 {
        %c0_i32_58 = arith.constant 0 : i32
        %c0_i32_59 = arith.constant 0 : i32
        %c0_i32_60 = arith.constant 0 : i32
        %c1_i32_61 = arith.constant 1 : i32
        %c0_i32_62 = arith.constant 0 : i32
        %c0_i32_63 = arith.constant 0 : i32
        %68 = tpu.memref_slice %arg4[%c0_i32_58, %c0_i32_59, %c0_i32_62, %c0_i32_63] : memref<2x2x8x256xf32, #tpu.memory_space<vmem>> -> memref<1x1x8x256xf32, #tpu.memory_space<vmem>>
        %69 = tpu.memref_squeeze %68 : memref<1x1x8x256xf32, #tpu.memory_space<vmem>> -> memref<8x256xf32, #tpu.memory_space<vmem>>
        %c0_i32_64 = arith.constant 0 : i32
        %c0_i32_65 = arith.constant 0 : i32
        %70 = tpu.memref_slice %arg3[%c0_i32_60, %c0_i32_64, %c0_i32_65] : memref<2x80x256xf32, #tpu.memory_space<any>> -> memref<1x8x256xf32, #tpu.memory_space<any>>
        %71 = tpu.memref_squeeze %70 : memref<1x8x256xf32, #tpu.memory_space<any>> -> memref<8x256xf32, #tpu.memory_space<any>>
        %72 = tpu.memref_slice %arg6[%51, %c1_i32_61] : memref<2x4x!tpu.dma_semaphore, #tpu.memory_space<semaphore_mem>> -> memref<1x1x!tpu.dma_semaphore, #tpu.memory_space<semaphore_mem>>
        %73 = tpu.memref_squeeze %72 : memref<1x1x!tpu.dma_semaphore, #tpu.memory_space<semaphore_mem>> -> memref<!tpu.dma_semaphore, #tpu.memory_space<semaphore_mem>>
        tpu.wait_dma2 semaphore(%73 : memref<!tpu.dma_semaphore, #tpu.memory_space<semaphore_mem>>) src(%69 : memref<8x256xf32, #tpu.memory_space<vmem>>) dst(%71 : memref<8x256xf32, #tpu.memory_space<any>>)
        %c0_i32_66 = arith.constant 0 : i32
        %c1_i32_67 = arith.constant 1 : i32
        %c1_i32_68 = arith.constant 1 : i32
        %c3_i32 = arith.constant 3 : i32
        %c0_i32_69 = arith.constant 0 : i32
        %c0_i32_70 = arith.constant 0 : i32
        %74 = tpu.memref_slice %arg4[%c0_i32_66, %c1_i32_67, %c0_i32_69, %c0_i32_70] : memref<2x2x8x256xf32, #tpu.memory_space<vmem>> -> memref<1x1x8x256xf32, #tpu.memory_space<vmem>>
        %75 = tpu.memref_squeeze %74 : memref<1x1x8x256xf32, #tpu.memory_space<vmem>> -> memref<8x256xf32, #tpu.memory_space<vmem>>
        %c0_i32_71 = arith.constant 0 : i32
        %c0_i32_72 = arith.constant 0 : i32
        %76 = tpu.memref_slice %arg3[%c1_i32_68, %c0_i32_71, %c0_i32_72] : memref<2x80x256xf32, #tpu.memory_space<any>> -> memref<1x8x256xf32, #tpu.memory_space<any>>
        %77 = tpu.memref_squeeze %76 : memref<1x8x256xf32, #tpu.memory_space<any>> -> memref<8x256xf32, #tpu.memory_space<any>>
        %78 = tpu.memref_slice %arg6[%51, %c3_i32] : memref<2x4x!tpu.dma_semaphore, #tpu.memory_space<semaphore_mem>> -> memref<1x1x!tpu.dma_semaphore, #tpu.memory_space<semaphore_mem>>
        %79 = tpu.memref_squeeze %78 : memref<1x1x!tpu.dma_semaphore, #tpu.memory_space<semaphore_mem>> -> memref<!tpu.dma_semaphore, #tpu.memory_space<semaphore_mem>>
        tpu.wait_dma2 semaphore(%79 : memref<!tpu.dma_semaphore, #tpu.memory_space<semaphore_mem>>) src(%75 : memref<8x256xf32, #tpu.memory_space<vmem>>) dst(%77 : memref<8x256xf32, #tpu.memory_space<any>>)
      } else {
      }
    } else {
    }
    %c0_i32_6 = arith.constant 0 : i32
    %14 = arith.cmpi eq, %arg0, %c0_i32_6 : i32
    %15 = arith.extui %14 : i1 to i32
    %c0_i32_7 = arith.constant 0 : i32
    %16 = arith.cmpi ne, %15, %c0_i32_7 : i32
    scf.if %16 {
      %c0_i32_38 = arith.constant 0 : i32
      %c0_i32_39 = arith.constant 0 : i32
      %c0_i32_40 = arith.constant 0 : i32
      %c0_i32_41 = arith.constant 0 : i32
      %c0_i32_42 = arith.constant 0 : i32
      %c0_i32_43 = arith.constant 0 : i32
      %51 = tpu.memref_slice %arg1[%c0_i32_42, %c0_i32_43] : memref<40x256xf32, #tpu.memory_space<any>> -> memref<8x256xf32, #tpu.memory_space<any>>
      %c0_i32_44 = arith.constant 0 : i32
      %c0_i32_45 = arith.constant 0 : i32
      %52 = tpu.memref_slice %arg4[%c0_i32_38, %c0_i32_39, %c0_i32_44, %c0_i32_45] : memref<2x2x8x256xf32, #tpu.memory_space<vmem>> -> memref<1x1x8x256xf32, #tpu.memory_space<vmem>>
      %53 = tpu.memref_squeeze %52 : memref<1x1x8x256xf32, #tpu.memory_space<vmem>> -> memref<8x256xf32, #tpu.memory_space<vmem>>
      %54 = tpu.memref_slice %arg5[%c0_i32_40, %c0_i32_41] : memref<2x2x!tpu.dma_semaphore, #tpu.memory_space<semaphore_mem>> -> memref<1x1x!tpu.dma_semaphore, #tpu.memory_space<semaphore_mem>>
      %55 = tpu.memref_squeeze %54 : memref<1x1x!tpu.dma_semaphore, #tpu.memory_space<semaphore_mem>> -> memref<!tpu.dma_semaphore, #tpu.memory_space<semaphore_mem>>
      tpu.enqueue_dma source(%51 : memref<8x256xf32, #tpu.memory_space<any>>) target(%53 : memref<8x256xf32, #tpu.memory_space<vmem>>) target_semaphore(%55 : memref<!tpu.dma_semaphore, #tpu.memory_space<semaphore_mem>>)
      %c0_i32_46 = arith.constant 0 : i32
      %c1_i32_47 = arith.constant 1 : i32
      %c0_i32_48 = arith.constant 0 : i32
      %c1_i32_49 = arith.constant 1 : i32
      %c0_i32_50 = arith.constant 0 : i32
      %c0_i32_51 = arith.constant 0 : i32
      %56 = tpu.memref_slice %arg2[%c0_i32_50, %c0_i32_51] : memref<40x256xf32, #tpu.memory_space<any>> -> memref<8x256xf32, #tpu.memory_space<any>>
      %c0_i32_52 = arith.constant 0 : i32
      %c0_i32_53 = arith.constant 0 : i32
      %57 = tpu.memref_slice %arg4[%c0_i32_46, %c1_i32_47, %c0_i32_52, %c0_i32_53] : memref<2x2x8x256xf32, #tpu.memory_space<vmem>> -> memref<1x1x8x256xf32, #tpu.memory_space<vmem>>
      %58 = tpu.memref_squeeze %57 : memref<1x1x8x256xf32, #tpu.memory_space<vmem>> -> memref<8x256xf32, #tpu.memory_space<vmem>>
      %59 = tpu.memref_slice %arg5[%c0_i32_48, %c1_i32_49] : memref<2x2x!tpu.dma_semaphore, #tpu.memory_space<semaphore_mem>> -> memref<1x1x!tpu.dma_semaphore, #tpu.memory_space<semaphore_mem>>
      %60 = tpu.memref_squeeze %59 : memref<1x1x!tpu.dma_semaphore, #tpu.memory_space<semaphore_mem>> -> memref<!tpu.dma_semaphore, #tpu.memory_space<semaphore_mem>>
      tpu.enqueue_dma source(%56 : memref<8x256xf32, #tpu.memory_space<any>>) target(%58 : memref<8x256xf32, #tpu.memory_space<vmem>>) target_semaphore(%60 : memref<!tpu.dma_semaphore, #tpu.memory_space<semaphore_mem>>)
    } else {
    }
    %c1_i32_8 = arith.constant 1 : i32
    %17 = arith.addi %arg0, %c1_i32_8 : i32
    %c5_i32 = arith.constant 5 : i32
    %18 = arith.cmpi slt, %17, %c5_i32 : i32
    %19 = arith.extui %18 : i1 to i32
    %c0_i32_9 = arith.constant 0 : i32
    %20 = arith.cmpi ne, %19, %c0_i32_9 : i32
    scf.if %20 {
      %c1_i32_38 = arith.constant 1 : i32
      %51 = arith.addi %arg0, %c1_i32_38 : i32
      %c8_i32_39 = arith.constant 8 : i32
      %52 = arith.muli %51, %c8_i32_39 : i32
      %c0_i32_40 = arith.constant 0 : i32
      %c0_i32_41 = arith.constant 0 : i32
      %c0_i32_42 = arith.constant 0 : i32
      %53 = tpu.memref_slice %arg1[%52, %c0_i32_42] : memref<40x256xf32, #tpu.memory_space<any>> -> memref<8x256xf32, #tpu.memory_space<any>>
      %c0_i32_43 = arith.constant 0 : i32
      %c0_i32_44 = arith.constant 0 : i32
      %54 = tpu.memref_slice %arg4[%10, %c0_i32_40, %c0_i32_43, %c0_i32_44] : memref<2x2x8x256xf32, #tpu.memory_space<vmem>> -> memref<1x1x8x256xf32, #tpu.memory_space<vmem>>
      %55 = tpu.memref_squeeze %54 : memref<1x1x8x256xf32, #tpu.memory_space<vmem>> -> memref<8x256xf32, #tpu.memory_space<vmem>>
      %56 = tpu.memref_slice %arg5[%10, %c0_i32_41] : memref<2x2x!tpu.dma_semaphore, #tpu.memory_space<semaphore_mem>> -> memref<1x1x!tpu.dma_semaphore, #tpu.memory_space<semaphore_mem>>
      %57 = tpu.memref_squeeze %56 : memref<1x1x!tpu.dma_semaphore, #tpu.memory_space<semaphore_mem>> -> memref<!tpu.dma_semaphore, #tpu.memory_space<semaphore_mem>>
      tpu.enqueue_dma source(%53 : memref<8x256xf32, #tpu.memory_space<any>>) target(%55 : memref<8x256xf32, #tpu.memory_space<vmem>>) target_semaphore(%57 : memref<!tpu.dma_semaphore, #tpu.memory_space<semaphore_mem>>)
      %c1_i32_45 = arith.constant 1 : i32
      %58 = arith.addi %arg0, %c1_i32_45 : i32
      %c8_i32_46 = arith.constant 8 : i32
      %59 = arith.muli %58, %c8_i32_46 : i32
      %c1_i32_47 = arith.constant 1 : i32
      %c1_i32_48 = arith.constant 1 : i32
      %c0_i32_49 = arith.constant 0 : i32
      %60 = tpu.memref_slice %arg2[%59, %c0_i32_49] : memref<40x256xf32, #tpu.memory_space<any>> -> memref<8x256xf32, #tpu.memory_space<any>>
      %c0_i32_50 = arith.constant 0 : i32
      %c0_i32_51 = arith.constant 0 : i32
      %61 = tpu.memref_slice %arg4[%10, %c1_i32_47, %c0_i32_50, %c0_i32_51] : memref<2x2x8x256xf32, #tpu.memory_space<vmem>> -> memref<1x1x8x256xf32, #tpu.memory_space<vmem>>
      %62 = tpu.memref_squeeze %61 : memref<1x1x8x256xf32, #tpu.memory_space<vmem>> -> memref<8x256xf32, #tpu.memory_space<vmem>>
      %63 = tpu.memref_slice %arg5[%10, %c1_i32_48] : memref<2x2x!tpu.dma_semaphore, #tpu.memory_space<semaphore_mem>> -> memref<1x1x!tpu.dma_semaphore, #tpu.memory_space<semaphore_mem>>
      %64 = tpu.memref_squeeze %63 : memref<1x1x!tpu.dma_semaphore, #tpu.memory_space<semaphore_mem>> -> memref<!tpu.dma_semaphore, #tpu.memory_space<semaphore_mem>>
      tpu.enqueue_dma source(%60 : memref<8x256xf32, #tpu.memory_space<any>>) target(%62 : memref<8x256xf32, #tpu.memory_space<vmem>>) target_semaphore(%64 : memref<!tpu.dma_semaphore, #tpu.memory_space<semaphore_mem>>)
    } else {
    }
    %c0_i32_10 = arith.constant 0 : i32
    %c0_i32_11 = arith.constant 0 : i32
    %c0_i32_12 = arith.constant 0 : i32
    %c0_i32_13 = arith.constant 0 : i32
    %21 = tpu.memref_slice %arg1[%c0_i32_12, %c0_i32_13] : memref<40x256xf32, #tpu.memory_space<any>> -> memref<8x256xf32, #tpu.memory_space<any>>
    %c0_i32_14 = arith.constant 0 : i32
    %c0_i32_15 = arith.constant 0 : i32
    %22 = tpu.memref_slice %arg4[%9, %c0_i32_10, %c0_i32_14, %c0_i32_15] : memref<2x2x8x256xf32, #tpu.memory_space<vmem>> -> memref<1x1x8x256xf32, #tpu.memory_space<vmem>>
    %23 = tpu.memref_squeeze %22 : memref<1x1x8x256xf32, #tpu.memory_space<vmem>> -> memref<8x256xf32, #tpu.memory_space<vmem>>
    %24 = tpu.memref_slice %arg5[%9, %c0_i32_11] : memref<2x2x!tpu.dma_semaphore, #tpu.memory_space<semaphore_mem>> -> memref<1x1x!tpu.dma_semaphore, #tpu.memory_space<semaphore_mem>>
    %25 = tpu.memref_squeeze %24 : memref<1x1x!tpu.dma_semaphore, #tpu.memory_space<semaphore_mem>> -> memref<!tpu.dma_semaphore, #tpu.memory_space<semaphore_mem>>
    tpu.wait_dma2 semaphore(%25 : memref<!tpu.dma_semaphore, #tpu.memory_space<semaphore_mem>>) src(%21 : memref<8x256xf32, #tpu.memory_space<any>>) dst(%23 : memref<8x256xf32, #tpu.memory_space<vmem>>)
    %c1_i32_16 = arith.constant 1 : i32
    %c1_i32_17 = arith.constant 1 : i32
    %c0_i32_18 = arith.constant 0 : i32
    %c0_i32_19 = arith.constant 0 : i32
    %26 = tpu.memref_slice %arg2[%c0_i32_18, %c0_i32_19] : memref<40x256xf32, #tpu.memory_space<any>> -> memref<8x256xf32, #tpu.memory_space<any>>
    %c0_i32_20 = arith.constant 0 : i32
    %c0_i32_21 = arith.constant 0 : i32
    %27 = tpu.memref_slice %arg4[%9, %c1_i32_16, %c0_i32_20, %c0_i32_21] : memref<2x2x8x256xf32, #tpu.memory_space<vmem>> -> memref<1x1x8x256xf32, #tpu.memory_space<vmem>>
    %28 = tpu.memref_squeeze %27 : memref<1x1x8x256xf32, #tpu.memory_space<vmem>> -> memref<8x256xf32, #tpu.memory_space<vmem>>
    %29 = tpu.memref_slice %arg5[%9, %c1_i32_17] : memref<2x2x!tpu.dma_semaphore, #tpu.memory_space<semaphore_mem>> -> memref<1x1x!tpu.dma_semaphore, #tpu.memory_space<semaphore_mem>>
    %30 = tpu.memref_squeeze %29 : memref<1x1x!tpu.dma_semaphore, #tpu.memory_space<semaphore_mem>> -> memref<!tpu.dma_semaphore, #tpu.memory_space<semaphore_mem>>
    tpu.wait_dma2 semaphore(%30 : memref<!tpu.dma_semaphore, #tpu.memory_space<semaphore_mem>>) src(%26 : memref<8x256xf32, #tpu.memory_space<any>>) dst(%28 : memref<8x256xf32, #tpu.memory_space<vmem>>)
    %c8_i32 = arith.constant 8 : i32
    %31 = arith.muli %arg0, %c8_i32 : i32
    %c0_i32_22 = arith.constant 0 : i32
    %c0_i32_23 = arith.constant 0 : i32
    %c0_i32_24 = arith.constant 0 : i32
    %c0_i32_25 = arith.constant 0 : i32
    %c0_i32_26 = arith.constant 0 : i32
    %32 = tpu.memref_slice %arg4[%9, %c0_i32_22, %c0_i32_25, %c0_i32_26] : memref<2x2x8x256xf32, #tpu.memory_space<vmem>> -> memref<1x1x8x256xf32, #tpu.memory_space<vmem>>
    %33 = tpu.memref_squeeze %32 : memref<1x1x8x256xf32, #tpu.memory_space<vmem>> -> memref<8x256xf32, #tpu.memory_space<vmem>>
    %c0_i32_27 = arith.constant 0 : i32
    %34 = tpu.memref_slice %arg3[%c0_i32_23, %31, %c0_i32_27] : memref<2x80x256xf32, #tpu.memory_space<any>> -> memref<1x8x256xf32, #tpu.memory_space<any>>
    %35 = tpu.memref_squeeze %34 : memref<1x8x256xf32, #tpu.memory_space<any>> -> memref<8x256xf32, #tpu.memory_space<any>>
    %36 = tpu.memref_slice %arg6[%9, %c0_i32_24] : memref<2x4x!tpu.dma_semaphore, #tpu.memory_space<semaphore_mem>> -> memref<1x1x!tpu.dma_semaphore, #tpu.memory_space<semaphore_mem>>
    %37 = tpu.memref_squeeze %36 : memref<1x1x!tpu.dma_semaphore, #tpu.memory_space<semaphore_mem>> -> memref<!tpu.dma_semaphore, #tpu.memory_space<semaphore_mem>>
    tpu.enqueue_dma source(%33 : memref<8x256xf32, #tpu.memory_space<vmem>>) target(%35 : memref<8x256xf32, #tpu.memory_space<any>>) target_semaphore(%37 : memref<!tpu.dma_semaphore, #tpu.memory_space<semaphore_mem>>)
    %c8_i32_28 = arith.constant 8 : i32
    %38 = arith.muli %arg0, %c8_i32_28 : i32
    %c1_i32_29 = arith.constant 1 : i32
    %c1_i32_30 = arith.constant 1 : i32
    %c2_i32_31 = arith.constant 2 : i32
    %c0_i32_32 = arith.constant 0 : i32
    %c0_i32_33 = arith.constant 0 : i32
    %39 = tpu.memref_slice %arg4[%9, %c1_i32_29, %c0_i32_32, %c0_i32_33] : memref<2x2x8x256xf32, #tpu.memory_space<vmem>> -> memref<1x1x8x256xf32, #tpu.memory_space<vmem>>
    %40 = tpu.memref_squeeze %39 : memref<1x1x8x256xf32, #tpu.memory_space<vmem>> -> memref<8x256xf32, #tpu.memory_space<vmem>>
    %c0_i32_34 = arith.constant 0 : i32
    %41 = tpu.memref_slice %arg3[%c1_i32_30, %38, %c0_i32_34] : memref<2x80x256xf32, #tpu.memory_space<any>> -> memref<1x8x256xf32, #tpu.memory_space<any>>
    %42 = tpu.memref_squeeze %41 : memref<1x8x256xf32, #tpu.memory_space<any>> -> memref<8x256xf32, #tpu.memory_space<any>>
    %43 = tpu.memref_slice %arg6[%9, %c2_i32_31] : memref<2x4x!tpu.dma_semaphore, #tpu.memory_space<semaphore_mem>> -> memref<1x1x!tpu.dma_semaphore, #tpu.memory_space<semaphore_mem>>
    %44 = tpu.memref_squeeze %43 : memref<1x1x!tpu.dma_semaphore, #tpu.memory_space<semaphore_mem>> -> memref<!tpu.dma_semaphore, #tpu.memory_space<semaphore_mem>>
    tpu.enqueue_dma source(%40 : memref<8x256xf32, #tpu.memory_space<vmem>>) target(%42 : memref<8x256xf32, #tpu.memory_space<any>>) target_semaphore(%44 : memref<!tpu.dma_semaphore, #tpu.memory_space<semaphore_mem>>)
    %c5_i32_35 = arith.constant 5 : i32
    %45 = arith.cmpi slt, %arg0, %c5_i32_35 : i32
    %46 = arith.extui %45 : i1 to i32
    %c0_i32_36 = arith.constant 0 : i32
    %47 = arith.cmpi ne, %46, %c0_i32_36 : i32
    scf.if %47 {
      %c8_i32_38 = arith.constant 8 : i32
      %51 = arith.muli %arg0, %c8_i32_38 : i32
      %c40_i32 = arith.constant 40 : i32
      %52 = arith.addi %c40_i32, %51 : i32
      %c0_i32_39 = arith.constant 0 : i32
      %c0_i32_40 = arith.constant 0 : i32
      %c1_i32_41 = arith.constant 1 : i32
      %c0_i32_42 = arith.constant 0 : i32
      %c0_i32_43 = arith.constant 0 : i32
      %53 = tpu.memref_slice %arg4[%9, %c0_i32_39, %c0_i32_42, %c0_i32_43] : memref<2x2x8x256xf32, #tpu.memory_space<vmem>> -> memref<1x1x8x256xf32, #tpu.memory_space<vmem>>
      %54 = tpu.memref_squeeze %53 : memref<1x1x8x256xf32, #tpu.memory_space<vmem>> -> memref<8x256xf32, #tpu.memory_space<vmem>>
      %c0_i32_44 = arith.constant 0 : i32
      %55 = tpu.memref_slice %arg3[%c0_i32_40, %52, %c0_i32_44] : memref<2x80x256xf32, #tpu.memory_space<any>> -> memref<1x8x256xf32, #tpu.memory_space<any>>
      %56 = tpu.memref_squeeze %55 : memref<1x8x256xf32, #tpu.memory_space<any>> -> memref<8x256xf32, #tpu.memory_space<any>>
      %57 = tpu.memref_slice %arg6[%9, %c1_i32_41] : memref<2x4x!tpu.dma_semaphore, #tpu.memory_space<semaphore_mem>> -> memref<1x1x!tpu.dma_semaphore, #tpu.memory_space<semaphore_mem>>
      %58 = tpu.memref_squeeze %57 : memref<1x1x!tpu.dma_semaphore, #tpu.memory_space<semaphore_mem>> -> memref<!tpu.dma_semaphore, #tpu.memory_space<semaphore_mem>>
      tpu.enqueue_dma source(%54 : memref<8x256xf32, #tpu.memory_space<vmem>>) target(%56 : memref<8x256xf32, #tpu.memory_space<any>>) target_semaphore(%58 : memref<!tpu.dma_semaphore, #tpu.memory_space<semaphore_mem>>)
      %c8_i32_45 = arith.constant 8 : i32
      %59 = arith.muli %arg0, %c8_i32_45 : i32
      %c40_i32_46 = arith.constant 40 : i32
      %60 = arith.addi %c40_i32_46, %59 : i32
      %c1_i32_47 = arith.constant 1 : i32
      %c1_i32_48 = arith.constant 1 : i32
      %c3_i32 = arith.constant 3 : i32
      %c0_i32_49 = arith.constant 0 : i32
      %c0_i32_50 = arith.constant 0 : i32
      %61 = tpu.memref_slice %arg4[%9, %c1_i32_47, %c0_i32_49, %c0_i32_50] : memref<2x2x8x256xf32, #tpu.memory_space<vmem>> -> memref<1x1x8x256xf32, #tpu.memory_space<vmem>>
      %62 = tpu.memref_squeeze %61 : memref<1x1x8x256xf32, #tpu.memory_space<vmem>> -> memref<8x256xf32, #tpu.memory_space<vmem>>
      %c0_i32_51 = arith.constant 0 : i32
      %63 = tpu.memref_slice %arg3[%c1_i32_48, %60, %c0_i32_51] : memref<2x80x256xf32, #tpu.memory_space<any>> -> memref<1x8x256xf32, #tpu.memory_space<any>>
      %64 = tpu.memref_squeeze %63 : memref<1x8x256xf32, #tpu.memory_space<any>> -> memref<8x256xf32, #tpu.memory_space<any>>
      %65 = tpu.memref_slice %arg6[%9, %c3_i32] : memref<2x4x!tpu.dma_semaphore, #tpu.memory_space<semaphore_mem>> -> memref<1x1x!tpu.dma_semaphore, #tpu.memory_space<semaphore_mem>>
      %66 = tpu.memref_squeeze %65 : memref<1x1x!tpu.dma_semaphore, #tpu.memory_space<semaphore_mem>> -> memref<!tpu.dma_semaphore, #tpu.memory_space<semaphore_mem>>
      tpu.enqueue_dma source(%62 : memref<8x256xf32, #tpu.memory_space<vmem>>) target(%64 : memref<8x256xf32, #tpu.memory_space<any>>) target_semaphore(%66 : memref<!tpu.dma_semaphore, #tpu.memory_space<semaphore_mem>>)
    } else {
    }
    %c4_i32 = arith.constant 4 : i32
    %48 = arith.cmpi eq, %arg0, %c4_i32 : i32
    %49 = arith.extui %48 : i1 to i32
    %c0_i32_37 = arith.constant 0 : i32
    %50 = arith.cmpi ne, %49, %c0_i32_37 : i32
    scf.if %50 {
      %c0_i32_38 = arith.constant 0 : i32
      %c0_i32_39 = arith.constant 0 : i32
      %c0_i32_40 = arith.constant 0 : i32
      %c0_i32_41 = arith.constant 0 : i32
      %c0_i32_42 = arith.constant 0 : i32
      %c0_i32_43 = arith.constant 0 : i32
      %51 = tpu.memref_slice %arg4[%c0_i32_38, %c0_i32_39, %c0_i32_42, %c0_i32_43] : memref<2x2x8x256xf32, #tpu.memory_space<vmem>> -> memref<1x1x8x256xf32, #tpu.memory_space<vmem>>
      %52 = tpu.memref_squeeze %51 : memref<1x1x8x256xf32, #tpu.memory_space<vmem>> -> memref<8x256xf32, #tpu.memory_space<vmem>>
      %c0_i32_44 = arith.constant 0 : i32
      %c0_i32_45 = arith.constant 0 : i32
      %53 = tpu.memref_slice %arg3[%c0_i32_40, %c0_i32_44, %c0_i32_45] : memref<2x80x256xf32, #tpu.memory_space<any>> -> memref<1x8x256xf32, #tpu.memory_space<any>>
      %54 = tpu.memref_squeeze %53 : memref<1x8x256xf32, #tpu.memory_space<any>> -> memref<8x256xf32, #tpu.memory_space<any>>
      %55 = tpu.memref_slice %arg6[%9, %c0_i32_41] : memref<2x4x!tpu.dma_semaphore, #tpu.memory_space<semaphore_mem>> -> memref<1x1x!tpu.dma_semaphore, #tpu.memory_space<semaphore_mem>>
      %56 = tpu.memref_squeeze %55 : memref<1x1x!tpu.dma_semaphore, #tpu.memory_space<semaphore_mem>> -> memref<!tpu.dma_semaphore, #tpu.memory_space<semaphore_mem>>
      tpu.wait_dma2 semaphore(%56 : memref<!tpu.dma_semaphore, #tpu.memory_space<semaphore_mem>>) src(%52 : memref<8x256xf32, #tpu.memory_space<vmem>>) dst(%54 : memref<8x256xf32, #tpu.memory_space<any>>)
      %c0_i32_46 = arith.constant 0 : i32
      %c1_i32_47 = arith.constant 1 : i32
      %c1_i32_48 = arith.constant 1 : i32
      %c2_i32_49 = arith.constant 2 : i32
      %c0_i32_50 = arith.constant 0 : i32
      %c0_i32_51 = arith.constant 0 : i32
      %57 = tpu.memref_slice %arg4[%c0_i32_46, %c1_i32_47, %c0_i32_50, %c0_i32_51] : memref<2x2x8x256xf32, #tpu.memory_space<vmem>> -> memref<1x1x8x256xf32, #tpu.memory_space<vmem>>
      %58 = tpu.memref_squeeze %57 : memref<1x1x8x256xf32, #tpu.memory_space<vmem>> -> memref<8x256xf32, #tpu.memory_space<vmem>>
      %c0_i32_52 = arith.constant 0 : i32
      %c0_i32_53 = arith.constant 0 : i32
      %59 = tpu.memref_slice %arg3[%c1_i32_48, %c0_i32_52, %c0_i32_53] : memref<2x80x256xf32, #tpu.memory_space<any>> -> memref<1x8x256xf32, #tpu.memory_space<any>>
      %60 = tpu.memref_squeeze %59 : memref<1x8x256xf32, #tpu.memory_space<any>> -> memref<8x256xf32, #tpu.memory_space<any>>
      %61 = tpu.memref_slice %arg6[%9, %c2_i32_49] : memref<2x4x!tpu.dma_semaphore, #tpu.memory_space<semaphore_mem>> -> memref<1x1x!tpu.dma_semaphore, #tpu.memory_space<semaphore_mem>>
      %62 = tpu.memref_squeeze %61 : memref<1x1x!tpu.dma_semaphore, #tpu.memory_space<semaphore_mem>> -> memref<!tpu.dma_semaphore, #tpu.memory_space<semaphore_mem>>
      tpu.wait_dma2 semaphore(%62 : memref<!tpu.dma_semaphore, #tpu.memory_space<semaphore_mem>>) src(%58 : memref<8x256xf32, #tpu.memory_space<vmem>>) dst(%60 : memref<8x256xf32, #tpu.memory_space<any>>)
      %c5_i32_54 = arith.constant 5 : i32
      %63 = arith.cmpi slt, %arg0, %c5_i32_54 : i32
      %64 = arith.extui %63 : i1 to i32
      %c0_i32_55 = arith.constant 0 : i32
      %65 = arith.cmpi ne, %64, %c0_i32_55 : i32
      scf.if %65 {
        %c0_i32_56 = arith.constant 0 : i32
        %c0_i32_57 = arith.constant 0 : i32
        %c0_i32_58 = arith.constant 0 : i32
        %c1_i32_59 = arith.constant 1 : i32
        %c0_i32_60 = arith.constant 0 : i32
        %c0_i32_61 = arith.constant 0 : i32
        %66 = tpu.memref_slice %arg4[%c0_i32_56, %c0_i32_57, %c0_i32_60, %c0_i32_61] : memref<2x2x8x256xf32, #tpu.memory_space<vmem>> -> memref<1x1x8x256xf32, #tpu.memory_space<vmem>>
        %67 = tpu.memref_squeeze %66 : memref<1x1x8x256xf32, #tpu.memory_space<vmem>> -> memref<8x256xf32, #tpu.memory_space<vmem>>
        %c0_i32_62 = arith.constant 0 : i32
        %c0_i32_63 = arith.constant 0 : i32
        %68 = tpu.memref_slice %arg3[%c0_i32_58, %c0_i32_62, %c0_i32_63] : memref<2x80x256xf32, #tpu.memory_space<any>> -> memref<1x8x256xf32, #tpu.memory_space<any>>
        %69 = tpu.memref_squeeze %68 : memref<1x8x256xf32, #tpu.memory_space<any>> -> memref<8x256xf32, #tpu.memory_space<any>>
        %70 = tpu.memref_slice %arg6[%9, %c1_i32_59] : memref<2x4x!tpu.dma_semaphore, #tpu.memory_space<semaphore_mem>> -> memref<1x1x!tpu.dma_semaphore, #tpu.memory_space<semaphore_mem>>
        %71 = tpu.memref_squeeze %70 : memref<1x1x!tpu.dma_semaphore, #tpu.memory_space<semaphore_mem>> -> memref<!tpu.dma_semaphore, #tpu.memory_space<semaphore_mem>>
        tpu.wait_dma2 semaphore(%71 : memref<!tpu.dma_semaphore, #tpu.memory_space<semaphore_mem>>) src(%67 : memref<8x256xf32, #tpu.memory_space<vmem>>) dst(%69 : memref<8x256xf32, #tpu.memory_space<any>>)
        %c0_i32_64 = arith.constant 0 : i32
        %c1_i32_65 = arith.constant 1 : i32
        %c1_i32_66 = arith.constant 1 : i32
        %c3_i32 = arith.constant 3 : i32
        %c0_i32_67 = arith.constant 0 : i32
        %c0_i32_68 = arith.constant 0 : i32
        %72 = tpu.memref_slice %arg4[%c0_i32_64, %c1_i32_65, %c0_i32_67, %c0_i32_68] : memref<2x2x8x256xf32, #tpu.memory_space<vmem>> -> memref<1x1x8x256xf32, #tpu.memory_space<vmem>>
        %73 = tpu.memref_squeeze %72 : memref<1x1x8x256xf32, #tpu.memory_space<vmem>> -> memref<8x256xf32, #tpu.memory_space<vmem>>
        %c0_i32_69 = arith.constant 0 : i32
        %c0_i32_70 = arith.constant 0 : i32
        %74 = tpu.memref_slice %arg3[%c1_i32_66, %c0_i32_69, %c0_i32_70] : memref<2x80x256xf32, #tpu.memory_space<any>> -> memref<1x8x256xf32, #tpu.memory_space<any>>
        %75 = tpu.memref_squeeze %74 : memref<1x8x256xf32, #tpu.memory_space<any>> -> memref<8x256xf32, #tpu.memory_space<any>>
        %76 = tpu.memref_slice %arg6[%9, %c3_i32] : memref<2x4x!tpu.dma_semaphore, #tpu.memory_space<semaphore_mem>> -> memref<1x1x!tpu.dma_semaphore, #tpu.memory_space<semaphore_mem>>
        %77 = tpu.memref_squeeze %76 : memref<1x1x!tpu.dma_semaphore, #tpu.memory_space<semaphore_mem>> -> memref<!tpu.dma_semaphore, #tpu.memory_space<semaphore_mem>>
        tpu.wait_dma2 semaphore(%77 : memref<!tpu.dma_semaphore, #tpu.memory_space<semaphore_mem>>) src(%73 : memref<8x256xf32, #tpu.memory_space<vmem>>) dst(%75 : memref<8x256xf32, #tpu.memory_space<any>>)
      } else {
      }
    } else {
    }
    return
  }
}

</mosaic_0001>

<llo_original>
// kernel: tpu_custom_call.1
$region0: #{tpu_custom_call.1}
  #allocation0 [shape = 'u32[]', space=smem, size = 0x4, offset = 0x4, fixed_abs, tag = 'smem constant byte address 0x4 - core index']
  #allocation1 [shape = 'u32[72,128]{1,0:T(1,128)}', space=vmem, size = 0x9000, scoped, tag = 'internal scratch']
  #allocation2 [shape = 'f32[2,2,8,256]{3,2,1,0:T(8,128)}', space=vmem, size = 0x8000, scoped, tag = 'scratch operand']
  #allocation3 [shape = 's32[4]{0}', space=sflag, size = 0x10, scoped, tag = 'scratch operand']
  #allocation4 [shape = 's32[8]{0}', space=sflag, size = 0x20, scoped, tag = 'scratch operand']
  #allocation5 [shape = 's32[]', space=sflag, size = 0x4, offset = 0, fixed_abs, tag = 'sflag constant byte address 0x0 - dummy sync flag']
  #allocation6 [shape = 's32[]', space=sflag, size = 0x4, offset = 0, fixed_abs, tag = 'sflag constant byte address 0x0 - dummy sync flag']
  #allocation7 [shape = 'u32[]', space=smem, size = 0x4, offset = 0x44, fixed_abs, tag = 'smem constant byte address 0x44 - assertion arg 0']
  #allocation8 [shape = 'u32[]', space=smem, size = 0x4, offset = 0x48, fixed_abs, tag = 'smem constant byte address 0x48 - assertion arg 1']
  #allocation9 [shape = 's32[]', space=sflag, size = 0x4, offset = 0, fixed_abs, tag = 'sflag constant byte address 0x0 - dummy sync flag']
  #allocation10 [shape = 's32[]', space=sflag, size = 0x4, offset = 0, fixed_abs, tag = 'sflag constant byte address 0x0 - dummy sync flag']
  #allocation11 [shape = 's32[]', space=sflag, size = 0x4, offset = 0, fixed_abs, tag = 'sflag constant byte address 0x0 - dummy sync flag']
  #allocation12 [shape = 's32[]', space=sflag, size = 0x4, offset = 0, fixed_abs, tag = 'sflag constant byte address 0x0 - dummy sync flag']
  #allocation13 [shape = 's32[]', space=sflag, size = 0x4, offset = 0, fixed_abs, tag = 'sflag constant byte address 0x0 - dummy sync flag']
  #allocation14 [shape = 's32[]', space=sflag, size = 0x4, offset = 0, fixed_abs, tag = 'sflag constant byte address 0x0 - dummy sync flag']
  #allocation15 [shape = 's32[]', space=sflag, size = 0x4, offset = 0, fixed_abs, tag = 'sflag constant byte address 0x0 - dummy sync flag']
  #allocation16 [shape = 's32[]', space=sflag, size = 0x4, offset = 0, fixed_abs, tag = 'sflag constant byte address 0x0 - dummy sync flag']
  #allocation17 [shape = 's32[]', space=sflag, size = 0x4, offset = 0, fixed_abs, tag = 'sflag constant byte address 0x0 - dummy sync flag']
  #allocation18 [shape = 's32[]', space=sflag, size = 0x4, offset = 0, fixed_abs, tag = 'sflag constant byte address 0x0 - dummy sync flag']
  #allocation19 [shape = 's32[]', space=sflag, size = 0x4, offset = 0, fixed_abs, tag = 'sflag constant byte address 0x0 - dummy sync flag']
  #allocation20 [shape = 's32[]', space=sflag, size = 0x4, offset = 0, fixed_abs, tag = 'sflag constant byte address 0x0 - dummy sync flag']
  #allocation21 [shape = 's32[]', space=sflag, size = 0x4, offset = 0, fixed_abs, tag = 'sflag constant byte address 0x0 - dummy sync flag']
  #allocation22 [shape = 's32[]', space=sflag, size = 0x4, offset = 0, fixed_abs, tag = 'sflag constant byte address 0x0 - dummy sync flag']
  %s0 = inlined_call_operand.hbm [shape: f32[40,256], index: 0, kind: input, shape index: {}]
  %s1 = inlined_call_operand.hbm [shape: f32[40,256], index: 1, kind: input, shape index: {}]
  %s2 = inlined_call_operand.hbm [shape: f32[2,80,256], index: 2, kind: output, shape index: {}]
  %s3 = sld [smem:[#allocation0]]
  $region69: #{tpu_custom_call.1} parent=0
    _
  %s5 = ssub.s32 1, %s3
  %s6 = scalar_select 0, %s5, %s3
  loop: start=0, step=1, limit=5
  $region2: #{tpu_custom_call.1} parent=0 // loop_pre_header
    _
  $region3: #{tpu_custom_call.1} parent=0 // loop_header
    %s8 = sphi 0, %s12
    %p9 = scmp.ge.s32.totalorder %s8, 5
  $region4: #{tpu_custom_call.1} parent=0 // loop_header_branch
    %11 = sbr.rel (%p9) target = $region8
  $region5: #{tpu_custom_call.1} parent=0 // loop_body
    %s13 = sadd.s32 %s8, 1
    %p14 = scmp.lt.s32.totalorder %s8, 0
    %s15 = ssub.s32 0, %s8
    %s16 = scalar_select %p14, %s15, %s8
    %s17 = sand.u32 %s16, 1
    %s18 = ssub.s32 0, %s17
    %s19 = scalar_select %p14, %s18, %s17
    %p20 = scmp.ne.s32.totalorder %s19, 0
    %p21 = scmp.lt.s32.totalorder %s19, 0
    %p22 = pnand %p21, %p20
    %p23 = pneg %p22
    %s24 = sadd.s32 %s19, 2
    %s25 = scalar_select %p23, %s24, %s19
    %s26 = ssub.s32 1, %s25
    %p27 = scmp.gt.s32.totalorder %s8, 0
    // Predicated region
    $region9: #{tpu_custom_call.1} parent=5 // pred_check
      %p28 = pneg %p27
    $region10: #{tpu_custom_call.1} parent=5 // pred_check_branch
      %30 = sbr.rel (%p28) target = $region12
    $region11: #{tpu_custom_call.1} parent=5 // pred_region
      %s31 = smul.u32 %s26, 4
      %s32 = scalar_lea.sflag [#allocation4], %s31
      %s33 = smul.u32 8, 1
      %s34 = smul.u32 %s33, 2
      %s35 = sshll.u32 %s34, 4
      %36 = dma.done %s32, %s35
      %s37 = sadd.s32 2, %s31
      %s38 = scalar_lea.sflag [#allocation4], %s37
      %s39 = sshll.u32 %s34, 4
      %40 = dma.done %s38, %s39
      %s41 = ssub.s32 %s8, 1
      %p42 = scmp.lt.s32.totalorder %s41, 5
      // Predicated region
      $region13: #{tpu_custom_call.1} parent=11 // pred_check
        %p43 = pneg %p42
      $region14: #{tpu_custom_call.1} parent=11 // pred_check_branch
        %45 = sbr.rel (%p43) target = $region16
      $region15: #{tpu_custom_call.1} parent=11 // pred_region
        %s46 = sadd.s32 1, %s31
        %s47 = scalar_lea.sflag [#allocation4], %s46
        %s48 = sshll.u32 %s34, 4
        %49 = dma.done %s47, %s48
        %s50 = sadd.s32 3, %s31
        %s51 = scalar_lea.sflag [#allocation4], %s50
        %s52 = sshll.u32 %s34, 4
        %53 = dma.done %s51, %s52
      $region16: #{tpu_custom_call.1} parent=11 // pred_fallthru
        _
    $region12: #{tpu_custom_call.1} parent=5 // pred_fallthru
      _
    %p54 = scmp.eq.s32.totalorder %s8, 0
    // Predicated region
    $region17: #{tpu_custom_call.1} parent=5 // pred_check
      %p55 = pneg %p54
    $region18: #{tpu_custom_call.1} parent=5 // pred_check_branch
      %57 = sbr.rel (%p55) target = $region20
    $region19: #{tpu_custom_call.1} parent=5 // pred_region
      // Predicated region
      $region21: #{tpu_custom_call.1} parent=19 // pred_check
        _
      $region22: #{tpu_custom_call.1} parent=19 // pred_check_branch
        %59 = sbr.rel target = $region24
      $region23: #{tpu_custom_call.1} parent=19 // pred_region
        %60 = sst [smem:[#allocation7]] [#allocation6]
        %61 = sst [smem:[#allocation8]] [#allocation5]
      $region24: #{tpu_custom_call.1} parent=19 // pred_fallthru
        _
      %63 = shalt.err (0)
      %s65 = sshll.u32 %s0, 4
      %s66 = int_to_ptr.hbm [resolvable:$true] %s65
      %s67 = sshll.u32 [#allocation2], 4
      %s68 = int_to_ptr.vmem [resolvable:$true] %s67
      %70 = dma.hbm_to_vmem [thread:$0]  %s66, 256, %s68, [#allocation3]
      %s71 = scalar_lea.vmem [#allocation2], 16
      %s72 = scalar_lea.sflag [#allocation3], 1
      // Predicated region
      $region25: #{tpu_custom_call.1} parent=19 // pred_check
        _
      $region26: #{tpu_custom_call.1} parent=19 // pred_check_branch
        %74 = sbr.rel target = $region28
      $region27: #{tpu_custom_call.1} parent=19 // pred_region
        %75 = sst [smem:[#allocation7]] [#allocation10]
        %76 = sst [smem:[#allocation8]] [#allocation9]
      $region28: #{tpu_custom_call.1} parent=19 // pred_fallthru
        _
      %78 = shalt.err (0)
      %s80 = sshll.u32 %s1, 4
      %s81 = int_to_ptr.hbm [resolvable:$true] %s80
      %s82 = sshll.u32 %s71, 4
      %s83 = int_to_ptr.vmem [resolvable:$true] %s82
      %85 = dma.hbm_to_vmem [thread:$0]  %s81, 256, %s83, %s72
    $region20: #{tpu_custom_call.1} parent=5 // pred_fallthru
      _
    %s86 = sadd.s32 %s8, 1
    %p87 = scmp.lt.s32.totalorder %s86, 5
    // Predicated region
    $region29: #{tpu_custom_call.1} parent=5 // pred_check
      %p88 = pneg %p87
    $region30: #{tpu_custom_call.1} parent=5 // pred_check_branch
      %90 = sbr.rel (%p88) target = $region32
    $region31: #{tpu_custom_call.1} parent=5 // pred_region
      %s91 = smul.u32 %s86, 8
      %s92 = sshra.s32 %s91, 3
      %s93 = sand.u32 %s91, 7
      %s94 = smul.u32 %s92, 2
      %s95 = smul.addr %s94, 8
      %s96 = scalar_lea.hbm %s0, %s95
      %s97 = smul.u32 %s26, 4
      %s98 = smul.addr %s97, 8
      %s99 = scalar_lea.vmem [#allocation2], %s98
      %s100 = smul.u32 %s26, 2
      %s101 = scalar_lea.sflag [#allocation3], %s100
      // Predicated region
      $region33: #{tpu_custom_call.1} parent=31 // pred_check
        _
      $region34: #{tpu_custom_call.1} parent=31 // pred_check_branch
        %103 = sbr.rel target = $region36
      $region35: #{tpu_custom_call.1} parent=31 // pred_region
        %104 = sst [smem:[#allocation7]] [#allocation12]
        %105 = sst [smem:[#allocation8]] [#allocation11]
      $region36: #{tpu_custom_call.1} parent=31 // pred_fallthru
        _
      %107 = shalt.err (0)
      %s109 = sshll.u32 %s96, 4
      %s110 = int_to_ptr.hbm [resolvable:$true] %s109
      %s111 = sshll.u32 %s99, 4
      %s112 = int_to_ptr.vmem [resolvable:$true] %s111
      %114 = dma.hbm_to_vmem [thread:$0]  %s110, 256, %s112, %s101
      %s115 = smul.addr %s94, 8
      %s116 = scalar_lea.hbm %s1, %s115
      %s117 = sadd.s32 2, %s97
      %s118 = smul.addr %s117, 8
      %s119 = scalar_lea.vmem [#allocation2], %s118
      %s120 = sadd.s32 1, %s100
      %s121 = scalar_lea.sflag [#allocation3], %s120
      // Predicated region
      $region37: #{tpu_custom_call.1} parent=31 // pred_check
        _
      $region38: #{tpu_custom_call.1} parent=31 // pred_check_branch
        %123 = sbr.rel target = $region40
      $region39: #{tpu_custom_call.1} parent=31 // pred_region
        %124 = sst [smem:[#allocation7]] [#allocation14]
        %125 = sst [smem:[#allocation8]] [#allocation13]
      $region40: #{tpu_custom_call.1} parent=31 // pred_fallthru
        _
      %127 = shalt.err (0)
      %s129 = sshll.u32 %s116, 4
      %s130 = int_to_ptr.hbm [resolvable:$true] %s129
      %s131 = sshll.u32 %s119, 4
      %s132 = int_to_ptr.vmem [resolvable:$true] %s131
      %134 = dma.hbm_to_vmem [thread:$0]  %s130, 256, %s132, %s121
    $region32: #{tpu_custom_call.1} parent=5 // pred_fallthru
      _
    %s135 = smul.u32 %s25, 4
    %s136 = smul.addr %s135, 8
    %s137 = scalar_lea.vmem [#allocation2], %s136
    %s138 = smul.u32 %s25, 2
    %s139 = scalar_lea.sflag [#allocation3], %s138
    %s140 = smul.u32 8, 1
    %s141 = smul.u32 %s140, 2
    %s142 = sshll.u32 %s141, 4
    %143 = dma.done %s139, %s142
    %s144 = sadd.s32 2, %s135
    %s145 = smul.addr %s144, 8
    %s146 = scalar_lea.vmem [#allocation2], %s145
    %s147 = sadd.s32 1, %s138
    %s148 = scalar_lea.sflag [#allocation3], %s147
    %s149 = sshll.u32 %s141, 4
    %150 = dma.done %s148, %s149
    %s151 = smul.u32 %s8, 8
    %s152 = sshra.s32 %s151, 3
    %s153 = sand.u32 %s151, 7
    %s154 = smul.u32 %s152, 2
    %s155 = smul.addr %s154, 8
    %s156 = scalar_lea.hbm %s2, %s155
    %s157 = scalar_lea.sflag [#allocation4], %s135
    // Predicated region
    $region41: #{tpu_custom_call.1} parent=5 // pred_check
      _
    $region42: #{tpu_custom_call.1} parent=5 // pred_check_branch
      %159 = sbr.rel target = $region44
    $region43: #{tpu_custom_call.1} parent=5 // pred_region
      %160 = sst [smem:[#allocation7]] [#allocation16]
      %161 = sst [smem:[#allocation8]] [#allocation15]
    $region44: #{tpu_custom_call.1} parent=5 // pred_fallthru
      _
    %163 = shalt.err (0)
    %s165 = sshll.u32 %s137, 4
    %s166 = int_to_ptr.vmem [resolvable:$true] %s165
    %s167 = sshll.u32 %s156, 4
    %s168 = int_to_ptr.hbm [resolvable:$true] %s167
    %170 = dma.vmem_to_hbm [thread:$0]  %s166, 256, %s168, %s157
    %s171 = sadd.s32 %s154, 20
    %s172 = smul.addr %s171, 8
    %s173 = scalar_lea.hbm %s2, %s172
    %s174 = scalar_lea.sflag [#allocation4], %s144
    // Predicated region
    $region45: #{tpu_custom_call.1} parent=5 // pred_check
      _
    $region46: #{tpu_custom_call.1} parent=5 // pred_check_branch
      %176 = sbr.rel target = $region48
    $region47: #{tpu_custom_call.1} parent=5 // pred_region
      %177 = sst [smem:[#allocation7]] [#allocation18]
      %178 = sst [smem:[#allocation8]] [#allocation17]
    $region48: #{tpu_custom_call.1} parent=5 // pred_fallthru
      _
    %180 = shalt.err (0)
    %s182 = sshll.u32 %s146, 4
    %s183 = int_to_ptr.vmem [resolvable:$true] %s182
    %s184 = sshll.u32 %s173, 4
    %s185 = int_to_ptr.hbm [resolvable:$true] %s184
    %187 = dma.vmem_to_hbm [thread:$0]  %s183, 256, %s185, %s174
    %p188 = scmp.lt.s32.totalorder %s8, 5
    // Predicated region
    $region49: #{tpu_custom_call.1} parent=5 // pred_check
      %p189 = pneg %p188
    $region50: #{tpu_custom_call.1} parent=5 // pred_check_branch
      %191 = sbr.rel (%p189) target = $region52
    $region51: #{tpu_custom_call.1} parent=5 // pred_region
      %s192 = sadd.s32 %s151, 40
      %s193 = sshra.s32 %s192, 3
      %s194 = sand.u32 %s192, 7
      %s195 = smul.u32 %s193, 2
      %s196 = smul.addr %s195, 8
      %s197 = scalar_lea.hbm %s2, %s196
      %s198 = sadd.s32 1, %s135
      %s199 = scalar_lea.sflag [#allocation4], %s198
      // Predicated region
      $region53: #{tpu_custom_call.1} parent=51 // pred_check
        _
      $region54: #{tpu_custom_call.1} parent=51 // pred_check_branch
        %201 = sbr.rel target = $region56
      $region55: #{tpu_custom_call.1} parent=51 // pred_region
        %202 = sst [smem:[#allocation7]] [#allocation20]
        %203 = sst [smem:[#allocation8]] [#allocation19]
      $region56: #{tpu_custom_call.1} parent=51 // pred_fallthru
        _
      %205 = shalt.err (0)
      %s207 = sshll.u32 %s137, 4
      %s208 = int_to_ptr.vmem [resolvable:$true] %s207
      %s209 = sshll.u32 %s197, 4
      %s210 = int_to_ptr.hbm [resolvable:$true] %s209
      %212 = dma.vmem_to_hbm [thread:$0]  %s208, 256, %s210, %s199
      %s213 = sadd.s32 %s195, 20
      %s214 = smul.addr %s213, 8
      %s215 = scalar_lea.hbm %s2, %s214
      %s216 = sadd.s32 3, %s135
      %s217 = scalar_lea.sflag [#allocation4], %s216
      // Predicated region
      $region57: #{tpu_custom_call.1} parent=51 // pred_check
        _
      $region58: #{tpu_custom_call.1} parent=51 // pred_check_branch
        %219 = sbr.rel target = $region60
      $region59: #{tpu_custom_call.1} parent=51 // pred_region
        %220 = sst [smem:[#allocation7]] [#allocation22]
        %221 = sst [smem:[#allocation8]] [#allocation21]
      $region60: #{tpu_custom_call.1} parent=51 // pred_fallthru
        _
      %223 = shalt.err (0)
      %s225 = sshll.u32 %s146, 4
      %s226 = int_to_ptr.vmem [resolvable:$true] %s225
      %s227 = sshll.u32 %s215, 4
      %s228 = int_to_ptr.hbm [resolvable:$true] %s227
      %230 = dma.vmem_to_hbm [thread:$0]  %s226, 256, %s228, %s217
    $region52: #{tpu_custom_call.1} parent=5 // pred_fallthru
      _
    %p231 = scmp.eq.s32.totalorder %s8, 4
    // Predicated region
    $region61: #{tpu_custom_call.1} parent=5 // pred_check
      %p232 = pneg %p231
    $region62: #{tpu_custom_call.1} parent=5 // pred_check_branch
      %234 = sbr.rel (%p232) target = $region64
    $region63: #{tpu_custom_call.1} parent=5 // pred_region
      %s235 = sshll.u32 %s141, 4
      %236 = dma.done %s157, %s235
      %s237 = sshll.u32 %s141, 4
      %238 = dma.done %s174, %s237
      // Predicated region
      $region65: #{tpu_custom_call.1} parent=63 // pred_check
        %p239 = pneg %p188
      $region66: #{tpu_custom_call.1} parent=63 // pred_check_branch
        %241 = sbr.rel (%p239) target = $region68
      $region67: #{tpu_custom_call.1} parent=63 // pred_region
        %s242 = sadd.s32 1, %s135
        %s243 = scalar_lea.sflag [#allocation4], %s242
        %s244 = sshll.u32 %s141, 4
        %245 = dma.done %s243, %s244
        %s246 = sadd.s32 3, %s135
        %s247 = scalar_lea.sflag [#allocation4], %s246
        %s248 = sshll.u32 %s141, 4
        %249 = dma.done %s247, %s248
      $region68: #{tpu_custom_call.1} parent=63 // pred_fallthru
        _
    $region64: #{tpu_custom_call.1} parent=5 // pred_fallthru
      _
  $region6: #{tpu_custom_call.1} parent=0 // loop_footer
    %s12 = sadd.s32 1, %s8
  $region7: #{tpu_custom_call.1} parent=0 // loop_footer_branch
    %7 = sbr.rel target = $region3
  $region8: #{tpu_custom_call.1} parent=0 // loop_exit
    _
  %250 = vsyncmov [#allocation3]
  %s251 = vpop.sfrf %250
  %p252 = scmp.eq.s32.totalorder %s251, 0
  %p253 = pneg %p252
  %255 = shalt.err (%p253)
  %s256 = scalar_lea.sflag [#allocation3], 1
  %257 = vsyncmov %s256
  %s258 = vpop.sfrf %257
  %p259 = scmp.eq.s32.totalorder %s258, 0
  %p260 = pneg %p259
  %262 = shalt.err (%p260)
  %s263 = scalar_lea.sflag [#allocation3], 2
  %264 = vsyncmov %s263
  %s265 = vpop.sfrf %264
  %p266 = scmp.eq.s32.totalorder %s265, 0
  %p267 = pneg %p266
  %269 = shalt.err (%p267)
  %s270 = scalar_lea.sflag [#allocation3], 3
  %271 = vsyncmov %s270
  %s272 = vpop.sfrf %271
  %p273 = scmp.eq.s32.totalorder %s272, 0
  %p274 = pneg %p273
  %276 = shalt.err (%p274)
  %277 = vsyncmov [#allocation4]
  %s278 = vpop.sfrf %277
  %p279 = scmp.eq.s32.totalorder %s278, 0
  %p280 = pneg %p279
  %282 = shalt.err (%p280)
  %s283 = scalar_lea.sflag [#allocation4], 1
  %284 = vsyncmov %s283
  %s285 = vpop.sfrf %284
  %p286 = scmp.eq.s32.totalorder %s285, 0
  %p287 = pneg %p286
  %289 = shalt.err (%p287)
  %s290 = scalar_lea.sflag [#allocation4], 2
  %291 = vsyncmov %s290
  %s292 = vpop.sfrf %291
  %p293 = scmp.eq.s32.totalorder %s292, 0
  %p294 = pneg %p293
  %296 = shalt.err (%p294)
  %s297 = scalar_lea.sflag [#allocation4], 3
  %298 = vsyncmov %s297
  %s299 = vpop.sfrf %298
  %p300 = scmp.eq.s32.totalorder %s299, 0
  %p301 = pneg %p300
  %303 = shalt.err (%p301)
  %s304 = scalar_lea.sflag [#allocation4], 4
  %305 = vsyncmov %s304
  %s306 = vpop.sfrf %305
  %p307 = scmp.eq.s32.totalorder %s306, 0
  %p308 = pneg %p307
  %310 = shalt.err (%p308)
  %s311 = scalar_lea.sflag [#allocation4], 5
  %312 = vsyncmov %s311
  %s313 = vpop.sfrf %312
  %p314 = scmp.eq.s32.totalorder %s313, 0
  %p315 = pneg %p314
  %317 = shalt.err (%p315)
  %s318 = scalar_lea.sflag [#allocation4], 6
  %319 = vsyncmov %s318
  %s320 = vpop.sfrf %319
  %p321 = scmp.eq.s32.totalorder %s320, 0
  %p322 = pneg %p321
  %324 = shalt.err (%p322)
  %s325 = scalar_lea.sflag [#allocation4], 7
  %326 = vsyncmov %s325
  %s327 = vpop.sfrf %326
  %p328 = scmp.eq.s32.totalorder %s327, 0
  %p329 = pneg %p328
  %331 = shalt.err (%p329)

</llo_original>
